<compile_context>
chip_gen: v5e
topology: v5e:2x2
jax: 0.10.0
libtpu: 0.0.40
codegen_flags: <defaults>
</compile_context>

<pallas_src>
import jax
import jax.numpy as jnp
from jax.experimental import pallas as pl
from jax.experimental.pallas import tpu as pltpu

HIDDEN = 32


def mlp_kernel(x_ref, w1_ref, b1_ref, w2_ref, b2_ref, o_ref):
    # x_ref / o_ref : (bm, C) lane-dense f32 tiles in VMEM.
    # w1_ref, b1_ref, w2_ref : (32,) f32 in SMEM;  b2_ref : (1,) f32 in SMEM.
    x = x_ref[...]
    y = jnp.full(x.shape, b2_ref[0], dtype=jnp.float32)  # single broadcast, hoisted
    # Unrolled per-hidden-unit scalar-broadcast FMA chain (VPU only, no MXU).
    # TODO(synk): if VALU ever binds on v6e (no f32 FMA), fold ops algebraically.
    for j in range(HIDDEN):
        h = jnp.maximum(w1_ref[j] * x + b1_ref[j], 0.0)   # ReLU(x*W1[j] + b1[j])
        y = y + w2_ref[j] * h
    o_ref[...] = y.astype(o_ref.dtype)


def _round_up(a, b):
    return ((a + b - 1) // b) * b


def pretrain_model_forward(x, w1, b1, w2, b2, *, block_rows=512, lane_width=512):
    """x: (N, 1) float32 -> (N, 1) float32, matching PretrainModel.forward.

    Weights follow the earlier convention: w1 (1,32), b1 (1,32), w2 (32,1), b2 (1,1).
    Block = (block_rows, lane_width) f32 = 1 MiB default; double-buffered in+out
    this stays ~4 MiB, well under the scoped-VMEM limits of v5e/v6e/v7x.
    """
    N, in_dim = x.shape
    assert in_dim == 1

    C = lane_width
    rows = pl.cdiv(N, C)
    bm = block_rows if rows > block_rows else rows  # full dim if small (no 8-div needed)
    rows_total = _round_up(rows, bm)
    total = rows_total * C

    # Flatten + zero-pad to the lane-dense slab (padded rows are computed then dropped).
    flat = jnp.zeros((total,), jnp.float32).at[:N].set(x.reshape(-1).astype(jnp.float32))
    x2d = flat.reshape(rows_total, C)

    grid = (rows_total // bm,)
    cost = pl.CostEstimate(
        flops=5 * HIDDEN * total,                      # ~160 flops / element
        transcendentals=0,
        bytes_accessed=8 * total + 4 * (3 * HIDDEN + 1),
    )

    out2d = pl.pallas_call(
        mlp_kernel,
        out_shape=jax.ShapeDtypeStruct((rows_total, C), jnp.float32),
        grid=grid,
        in_specs=[
            pl.BlockSpec((bm, C), lambda i: (i, 0)),                      # x tile (VMEM)
            pl.BlockSpec(memory_space=pltpu.MemorySpace.SMEM),            # w1 (32,)
            pl.BlockSpec(memory_space=pltpu.MemorySpace.SMEM),            # b1 (32,)
            pl.BlockSpec(memory_space=pltpu.MemorySpace.SMEM),            # w2 (32,)
            pl.BlockSpec(memory_space=pltpu.MemorySpace.SMEM),            # b2 (1,)
        ],
        out_specs=pl.BlockSpec((bm, C), lambda i: (i, 0)),
        compiler_params=pltpu.CompilerParams(dimension_semantics=("parallel",)),
        cost_estimate=cost,
    )(
        x2d,
        w1.reshape(HIDDEN).astype(jnp.float32),
        b1.reshape(HIDDEN).astype(jnp.float32),
        w2.reshape(HIDDEN).astype(jnp.float32),
        b2.reshape(1).astype(jnp.float32),
    )

    return out2d.reshape(-1)[:N].reshape(N, 1)


def init_params(key):
    """Deterministic init matching nn.Linear's default U(-1/sqrt(fan_in), 1/sqrt(fan_in))."""
    k1, k2, k3, k4 = jax.random.split(key, 4)
    bound1 = 1.0 / jnp.sqrt(1.0)    # fan_in = 1
    bound2 = 1.0 / jnp.sqrt(32.0)   # fan_in = 32
    w1 = jax.random.uniform(k1, (1, HIDDEN), jnp.float32, -bound1, bound1)
    b1 = jax.random.uniform(k2, (1, HIDDEN), jnp.float32, -bound1, bound1)
    w2 = jax.random.uniform(k3, (HIDDEN, 1), jnp.float32, -bound2, bound2)
    b2 = jax.random.uniform(k4, (1, 1), jnp.float32, -bound2, bound2)
    return w1, b1, w2, b2


if __name__ == "__main__":
    key = jax.random.PRNGKey(0)
    kx, kp = jax.random.split(key)

    # Mirror the data-gen in the original script: x = rand(N,1)*6 - 3
    N = 1000
    x = jax.random.uniform(kx, (N, 1), jnp.float32) * 6.0 - 3.0

    w1, b1, w2, b2 = init_params(kp)

    out = pretrain_model_forward(x, w1, b1, w2, b2)
    out = jax.block_until_ready(out)

    # Pure-JAX reference of the same forward semantics.
    ref = jnp.maximum(x @ w1 + b1, 0.0) @ w2 + b2
    assert out.shape == (N, 1)
    assert jnp.allclose(out, ref, atol=1e-4, rtol=1e-5), float(jnp.max(jnp.abs(out - ref)))

    print("KERNEL_OK")
</pallas_src>

<mosaic_0001>
module attributes {stable_mosaic.version = 11 : i64} {
  func.func @mlp_kernel(%arg0: i32, %arg1: memref<2x512xf32, #tpu.memory_space<vmem>>, %arg2: memref<32xf32, #tpu.memory_space<smem>>, %arg3: memref<32xf32, #tpu.memory_space<smem>>, %arg4: memref<32xf32, #tpu.memory_space<smem>>, %arg5: memref<1xf32, #tpu.memory_space<smem>>, %arg6: memref<2x512xf32, #tpu.memory_space<vmem>>) attributes {dimension_semantics = [#tpu.dimension_semantics<parallel>], iteration_bounds = array<i64: 1>, scalar_prefetch = 0 : i64, scratch_operands = 0 : i64, tpu.core_type = #tpu.core_type<tc>, window_params = [{transform_indices = @transform_0, window_bounds = array<i64: 2, 512>}, {transform_indices = @transform_1, window_bounds = array<i64: 32>}, {transform_indices = @transform_2, window_bounds = array<i64: 32>}, {transform_indices = @transform_3, window_bounds = array<i64: 32>}, {transform_indices = @transform_4, window_bounds = array<i64: 1>}, {transform_indices = @transform_5, window_bounds = array<i64: 2, 512>}]} {
    %c0 = arith.constant 0 : index
    %c0_0 = arith.constant 0 : index
    %0 = vector.load %arg1[%c0, %c0_0] : memref<2x512xf32, #tpu.memory_space<vmem>>, vector<2x512xf32>
    %c0_1 = arith.constant 0 : index
    %1 = memref.load %arg5[%c0_1] : memref<1xf32, #tpu.memory_space<smem>>
    %2 = vector.broadcast %1 : f32 to vector<2x512xf32>
    %c0_2 = arith.constant 0 : index
    %3 = memref.load %arg2[%c0_2] : memref<32xf32, #tpu.memory_space<smem>>
    %4 = vector.broadcast %3 : f32 to vector<2x512xf32>
    %5 = arith.mulf %4, %0 : vector<2x512xf32>
    %c0_3 = arith.constant 0 : index
    %6 = memref.load %arg3[%c0_3] : memref<32xf32, #tpu.memory_space<smem>>
    %7 = vector.broadcast %6 : f32 to vector<2x512xf32>
    %8 = arith.addf %5, %7 : vector<2x512xf32>
    %cst = arith.constant 0.000000e+00 : f32
    %9 = vector.broadcast %cst : f32 to vector<2x512xf32>
    %10 = arith.maximumf %8, %9 : vector<2x512xf32>
    %c0_4 = arith.constant 0 : index
    %11 = memref.load %arg4[%c0_4] : memref<32xf32, #tpu.memory_space<smem>>
    %12 = vector.broadcast %11 : f32 to vector<2x512xf32>
    %13 = arith.mulf %12, %10 : vector<2x512xf32>
    %14 = arith.addf %2, %13 : vector<2x512xf32>
    %c1 = arith.constant 1 : index
    %15 = memref.load %arg2[%c1] : memref<32xf32, #tpu.memory_space<smem>>
    %16 = vector.broadcast %15 : f32 to vector<2x512xf32>
    %17 = arith.mulf %16, %0 : vector<2x512xf32>
    %c1_5 = arith.constant 1 : index
    %18 = memref.load %arg3[%c1_5] : memref<32xf32, #tpu.memory_space<smem>>
    %19 = vector.broadcast %18 : f32 to vector<2x512xf32>
    %20 = arith.addf %17, %19 : vector<2x512xf32>
    %cst_6 = arith.constant 0.000000e+00 : f32
    %21 = vector.broadcast %cst_6 : f32 to vector<2x512xf32>
    %22 = arith.maximumf %20, %21 : vector<2x512xf32>
    %c1_7 = arith.constant 1 : index
    %23 = memref.load %arg4[%c1_7] : memref<32xf32, #tpu.memory_space<smem>>
    %24 = vector.broadcast %23 : f32 to vector<2x512xf32>
    %25 = arith.mulf %24, %22 : vector<2x512xf32>
    %26 = arith.addf %14, %25 : vector<2x512xf32>
    %c2 = arith.constant 2 : index
    %27 = memref.load %arg2[%c2] : memref<32xf32, #tpu.memory_space<smem>>
    %28 = vector.broadcast %27 : f32 to vector<2x512xf32>
    %29 = arith.mulf %28, %0 : vector<2x512xf32>
    %c2_8 = arith.constant 2 : index
    %30 = memref.load %arg3[%c2_8] : memref<32xf32, #tpu.memory_space<smem>>
    %31 = vector.broadcast %30 : f32 to vector<2x512xf32>
    %32 = arith.addf %29, %31 : vector<2x512xf32>
    %cst_9 = arith.constant 0.000000e+00 : f32
    %33 = vector.broadcast %cst_9 : f32 to vector<2x512xf32>
    %34 = arith.maximumf %32, %33 : vector<2x512xf32>
    %c2_10 = arith.constant 2 : index
    %35 = memref.load %arg4[%c2_10] : memref<32xf32, #tpu.memory_space<smem>>
    %36 = vector.broadcast %35 : f32 to vector<2x512xf32>
    %37 = arith.mulf %36, %34 : vector<2x512xf32>
    %38 = arith.addf %26, %37 : vector<2x512xf32>
    %c3 = arith.constant 3 : index
    %39 = memref.load %arg2[%c3] : memref<32xf32, #tpu.memory_space<smem>>
    %40 = vector.broadcast %39 : f32 to vector<2x512xf32>
    %41 = arith.mulf %40, %0 : vector<2x512xf32>
    %c3_11 = arith.constant 3 : index
    %42 = memref.load %arg3[%c3_11] : memref<32xf32, #tpu.memory_space<smem>>
    %43 = vector.broadcast %42 : f32 to vector<2x512xf32>
    %44 = arith.addf %41, %43 : vector<2x512xf32>
    %cst_12 = arith.constant 0.000000e+00 : f32
    %45 = vector.broadcast %cst_12 : f32 to vector<2x512xf32>
    %46 = arith.maximumf %44, %45 : vector<2x512xf32>
    %c3_13 = arith.constant 3 : index
    %47 = memref.load %arg4[%c3_13] : memref<32xf32, #tpu.memory_space<smem>>
    %48 = vector.broadcast %47 : f32 to vector<2x512xf32>
    %49 = arith.mulf %48, %46 : vector<2x512xf32>
    %50 = arith.addf %38, %49 : vector<2x512xf32>
    %c4 = arith.constant 4 : index
    %51 = memref.load %arg2[%c4] : memref<32xf32, #tpu.memory_space<smem>>
    %52 = vector.broadcast %51 : f32 to vector<2x512xf32>
    %53 = arith.mulf %52, %0 : vector<2x512xf32>
    %c4_14 = arith.constant 4 : index
    %54 = memref.load %arg3[%c4_14] : memref<32xf32, #tpu.memory_space<smem>>
    %55 = vector.broadcast %54 : f32 to vector<2x512xf32>
    %56 = arith.addf %53, %55 : vector<2x512xf32>
    %cst_15 = arith.constant 0.000000e+00 : f32
    %57 = vector.broadcast %cst_15 : f32 to vector<2x512xf32>
    %58 = arith.maximumf %56, %57 : vector<2x512xf32>
    %c4_16 = arith.constant 4 : index
    %59 = memref.load %arg4[%c4_16] : memref<32xf32, #tpu.memory_space<smem>>
    %60 = vector.broadcast %59 : f32 to vector<2x512xf32>
    %61 = arith.mulf %60, %58 : vector<2x512xf32>
    %62 = arith.addf %50, %61 : vector<2x512xf32>
    %c5 = arith.constant 5 : index
    %63 = memref.load %arg2[%c5] : memref<32xf32, #tpu.memory_space<smem>>
    %64 = vector.broadcast %63 : f32 to vector<2x512xf32>
    %65 = arith.mulf %64, %0 : vector<2x512xf32>
    %c5_17 = arith.constant 5 : index
    %66 = memref.load %arg3[%c5_17] : memref<32xf32, #tpu.memory_space<smem>>
    %67 = vector.broadcast %66 : f32 to vector<2x512xf32>
    %68 = arith.addf %65, %67 : vector<2x512xf32>
    %cst_18 = arith.constant 0.000000e+00 : f32
    %69 = vector.broadcast %cst_18 : f32 to vector<2x512xf32>
    %70 = arith.maximumf %68, %69 : vector<2x512xf32>
    %c5_19 = arith.constant 5 : index
    %71 = memref.load %arg4[%c5_19] : memref<32xf32, #tpu.memory_space<smem>>
    %72 = vector.broadcast %71 : f32 to vector<2x512xf32>
    %73 = arith.mulf %72, %70 : vector<2x512xf32>
    %74 = arith.addf %62, %73 : vector<2x512xf32>
    %c6 = arith.constant 6 : index
    %75 = memref.load %arg2[%c6] : memref<32xf32, #tpu.memory_space<smem>>
    %76 = vector.broadcast %75 : f32 to vector<2x512xf32>
    %77 = arith.mulf %76, %0 : vector<2x512xf32>
    %c6_20 = arith.constant 6 : index
    %78 = memref.load %arg3[%c6_20] : memref<32xf32, #tpu.memory_space<smem>>
    %79 = vector.broadcast %78 : f32 to vector<2x512xf32>
    %80 = arith.addf %77, %79 : vector<2x512xf32>
    %cst_21 = arith.constant 0.000000e+00 : f32
    %81 = vector.broadcast %cst_21 : f32 to vector<2x512xf32>
    %82 = arith.maximumf %80, %81 : vector<2x512xf32>
    %c6_22 = arith.constant 6 : index
    %83 = memref.load %arg4[%c6_22] : memref<32xf32, #tpu.memory_space<smem>>
    %84 = vector.broadcast %83 : f32 to vector<2x512xf32>
    %85 = arith.mulf %84, %82 : vector<2x512xf32>
    %86 = arith.addf %74, %85 : vector<2x512xf32>
    %c7 = arith.constant 7 : index
    %87 = memref.load %arg2[%c7] : memref<32xf32, #tpu.memory_space<smem>>
    %88 = vector.broadcast %87 : f32 to vector<2x512xf32>
    %89 = arith.mulf %88, %0 : vector<2x512xf32>
    %c7_23 = arith.constant 7 : index
    %90 = memref.load %arg3[%c7_23] : memref<32xf32, #tpu.memory_space<smem>>
    %91 = vector.broadcast %90 : f32 to vector<2x512xf32>
    %92 = arith.addf %89, %91 : vector<2x512xf32>
    %cst_24 = arith.constant 0.000000e+00 : f32
    %93 = vector.broadcast %cst_24 : f32 to vector<2x512xf32>
    %94 = arith.maximumf %92, %93 : vector<2x512xf32>
    %c7_25 = arith.constant 7 : index
    %95 = memref.load %arg4[%c7_25] : memref<32xf32, #tpu.memory_space<smem>>
    %96 = vector.broadcast %95 : f32 to vector<2x512xf32>
    %97 = arith.mulf %96, %94 : vector<2x512xf32>
    %98 = arith.addf %86, %97 : vector<2x512xf32>
    %c8 = arith.constant 8 : index
    %99 = memref.load %arg2[%c8] : memref<32xf32, #tpu.memory_space<smem>>
    %100 = vector.broadcast %99 : f32 to vector<2x512xf32>
    %101 = arith.mulf %100, %0 : vector<2x512xf32>
    %c8_26 = arith.constant 8 : index
    %102 = memref.load %arg3[%c8_26] : memref<32xf32, #tpu.memory_space<smem>>
    %103 = vector.broadcast %102 : f32 to vector<2x512xf32>
    %104 = arith.addf %101, %103 : vector<2x512xf32>
    %cst_27 = arith.constant 0.000000e+00 : f32
    %105 = vector.broadcast %cst_27 : f32 to vector<2x512xf32>
    %106 = arith.maximumf %104, %105 : vector<2x512xf32>
    %c8_28 = arith.constant 8 : index
    %107 = memref.load %arg4[%c8_28] : memref<32xf32, #tpu.memory_space<smem>>
    %108 = vector.broadcast %107 : f32 to vector<2x512xf32>
    %109 = arith.mulf %108, %106 : vector<2x512xf32>
    %110 = arith.addf %98, %109 : vector<2x512xf32>
    %c9 = arith.constant 9 : index
    %111 = memref.load %arg2[%c9] : memref<32xf32, #tpu.memory_space<smem>>
    %112 = vector.broadcast %111 : f32 to vector<2x512xf32>
    %113 = arith.mulf %112, %0 : vector<2x512xf32>
    %c9_29 = arith.constant 9 : index
    %114 = memref.load %arg3[%c9_29] : memref<32xf32, #tpu.memory_space<smem>>
    %115 = vector.broadcast %114 : f32 to vector<2x512xf32>
    %116 = arith.addf %113, %115 : vector<2x512xf32>
    %cst_30 = arith.constant 0.000000e+00 : f32
    %117 = vector.broadcast %cst_30 : f32 to vector<2x512xf32>
    %118 = arith.maximumf %116, %117 : vector<2x512xf32>
    %c9_31 = arith.constant 9 : index
    %119 = memref.load %arg4[%c9_31] : memref<32xf32, #tpu.memory_space<smem>>
    %120 = vector.broadcast %119 : f32 to vector<2x512xf32>
    %121 = arith.mulf %120, %118 : vector<2x512xf32>
    %122 = arith.addf %110, %121 : vector<2x512xf32>
    %c10 = arith.constant 10 : index
    %123 = memref.load %arg2[%c10] : memref<32xf32, #tpu.memory_space<smem>>
    %124 = vector.broadcast %123 : f32 to vector<2x512xf32>
    %125 = arith.mulf %124, %0 : vector<2x512xf32>
    %c10_32 = arith.constant 10 : index
    %126 = memref.load %arg3[%c10_32] : memref<32xf32, #tpu.memory_space<smem>>
    %127 = vector.broadcast %126 : f32 to vector<2x512xf32>
    %128 = arith.addf %125, %127 : vector<2x512xf32>
    %cst_33 = arith.constant 0.000000e+00 : f32
    %129 = vector.broadcast %cst_33 : f32 to vector<2x512xf32>
    %130 = arith.maximumf %128, %129 : vector<2x512xf32>
    %c10_34 = arith.constant 10 : index
    %131 = memref.load %arg4[%c10_34] : memref<32xf32, #tpu.memory_space<smem>>
    %132 = vector.broadcast %131 : f32 to vector<2x512xf32>
    %133 = arith.mulf %132, %130 : vector<2x512xf32>
    %134 = arith.addf %122, %133 : vector<2x512xf32>
    %c11 = arith.constant 11 : index
    %135 = memref.load %arg2[%c11] : memref<32xf32, #tpu.memory_space<smem>>
    %136 = vector.broadcast %135 : f32 to vector<2x512xf32>
    %137 = arith.mulf %136, %0 : vector<2x512xf32>
    %c11_35 = arith.constant 11 : index
    %138 = memref.load %arg3[%c11_35] : memref<32xf32, #tpu.memory_space<smem>>
    %139 = vector.broadcast %138 : f32 to vector<2x512xf32>
    %140 = arith.addf %137, %139 : vector<2x512xf32>
    %cst_36 = arith.constant 0.000000e+00 : f32
    %141 = vector.broadcast %cst_36 : f32 to vector<2x512xf32>
    %142 = arith.maximumf %140, %141 : vector<2x512xf32>
    %c11_37 = arith.constant 11 : index
    %143 = memref.load %arg4[%c11_37] : memref<32xf32, #tpu.memory_space<smem>>
    %144 = vector.broadcast %143 : f32 to vector<2x512xf32>
    %145 = arith.mulf %144, %142 : vector<2x512xf32>
    %146 = arith.addf %134, %145 : vector<2x512xf32>
    %c12 = arith.constant 12 : index
    %147 = memref.load %arg2[%c12] : memref<32xf32, #tpu.memory_space<smem>>
    %148 = vector.broadcast %147 : f32 to vector<2x512xf32>
    %149 = arith.mulf %148, %0 : vector<2x512xf32>
    %c12_38 = arith.constant 12 : index
    %150 = memref.load %arg3[%c12_38] : memref<32xf32, #tpu.memory_space<smem>>
    %151 = vector.broadcast %150 : f32 to vector<2x512xf32>
    %152 = arith.addf %149, %151 : vector<2x512xf32>
    %cst_39 = arith.constant 0.000000e+00 : f32
    %153 = vector.broadcast %cst_39 : f32 to vector<2x512xf32>
    %154 = arith.maximumf %152, %153 : vector<2x512xf32>
    %c12_40 = arith.constant 12 : index
    %155 = memref.load %arg4[%c12_40] : memref<32xf32, #tpu.memory_space<smem>>
    %156 = vector.broadcast %155 : f32 to vector<2x512xf32>
    %157 = arith.mulf %156, %154 : vector<2x512xf32>
    %158 = arith.addf %146, %157 : vector<2x512xf32>
    %c13 = arith.constant 13 : index
    %159 = memref.load %arg2[%c13] : memref<32xf32, #tpu.memory_space<smem>>
    %160 = vector.broadcast %159 : f32 to vector<2x512xf32>
    %161 = arith.mulf %160, %0 : vector<2x512xf32>
    %c13_41 = arith.constant 13 : index
    %162 = memref.load %arg3[%c13_41] : memref<32xf32, #tpu.memory_space<smem>>
    %163 = vector.broadcast %162 : f32 to vector<2x512xf32>
    %164 = arith.addf %161, %163 : vector<2x512xf32>
    %cst_42 = arith.constant 0.000000e+00 : f32
    %165 = vector.broadcast %cst_42 : f32 to vector<2x512xf32>
    %166 = arith.maximumf %164, %165 : vector<2x512xf32>
    %c13_43 = arith.constant 13 : index
    %167 = memref.load %arg4[%c13_43] : memref<32xf32, #tpu.memory_space<smem>>
    %168 = vector.broadcast %167 : f32 to vector<2x512xf32>
    %169 = arith.mulf %168, %166 : vector<2x512xf32>
    %170 = arith.addf %158, %169 : vector<2x512xf32>
    %c14 = arith.constant 14 : index
    %171 = memref.load %arg2[%c14] : memref<32xf32, #tpu.memory_space<smem>>
    %172 = vector.broadcast %171 : f32 to vector<2x512xf32>
    %173 = arith.mulf %172, %0 : vector<2x512xf32>
    %c14_44 = arith.constant 14 : index
    %174 = memref.load %arg3[%c14_44] : memref<32xf32, #tpu.memory_space<smem>>
    %175 = vector.broadcast %174 : f32 to vector<2x512xf32>
    %176 = arith.addf %173, %175 : vector<2x512xf32>
    %cst_45 = arith.constant 0.000000e+00 : f32
    %177 = vector.broadcast %cst_45 : f32 to vector<2x512xf32>
    %178 = arith.maximumf %176, %177 : vector<2x512xf32>
    %c14_46 = arith.constant 14 : index
    %179 = memref.load %arg4[%c14_46] : memref<32xf32, #tpu.memory_space<smem>>
    %180 = vector.broadcast %179 : f32 to vector<2x512xf32>
    %181 = arith.mulf %180, %178 : vector<2x512xf32>
    %182 = arith.addf %170, %181 : vector<2x512xf32>
    %c15 = arith.constant 15 : index
    %183 = memref.load %arg2[%c15] : memref<32xf32, #tpu.memory_space<smem>>
    %184 = vector.broadcast %183 : f32 to vector<2x512xf32>
    %185 = arith.mulf %184, %0 : vector<2x512xf32>
    %c15_47 = arith.constant 15 : index
    %186 = memref.load %arg3[%c15_47] : memref<32xf32, #tpu.memory_space<smem>>
    %187 = vector.broadcast %186 : f32 to vector<2x512xf32>
    %188 = arith.addf %185, %187 : vector<2x512xf32>
    %cst_48 = arith.constant 0.000000e+00 : f32
    %189 = vector.broadcast %cst_48 : f32 to vector<2x512xf32>
    %190 = arith.maximumf %188, %189 : vector<2x512xf32>
    %c15_49 = arith.constant 15 : index
    %191 = memref.load %arg4[%c15_49] : memref<32xf32, #tpu.memory_space<smem>>
    %192 = vector.broadcast %191 : f32 to vector<2x512xf32>
    %193 = arith.mulf %192, %190 : vector<2x512xf32>
    %194 = arith.addf %182, %193 : vector<2x512xf32>
    %c16 = arith.constant 16 : index
    %195 = memref.load %arg2[%c16] : memref<32xf32, #tpu.memory_space<smem>>
    %196 = vector.broadcast %195 : f32 to vector<2x512xf32>
    %197 = arith.mulf %196, %0 : vector<2x512xf32>
    %c16_50 = arith.constant 16 : index
    %198 = memref.load %arg3[%c16_50] : memref<32xf32, #tpu.memory_space<smem>>
    %199 = vector.broadcast %198 : f32 to vector<2x512xf32>
    %200 = arith.addf %197, %199 : vector<2x512xf32>
    %cst_51 = arith.constant 0.000000e+00 : f32
    %201 = vector.broadcast %cst_51 : f32 to vector<2x512xf32>
    %202 = arith.maximumf %200, %201 : vector<2x512xf32>
    %c16_52 = arith.constant 16 : index
    %203 = memref.load %arg4[%c16_52] : memref<32xf32, #tpu.memory_space<smem>>
    %204 = vector.broadcast %203 : f32 to vector<2x512xf32>
    %205 = arith.mulf %204, %202 : vector<2x512xf32>
    %206 = arith.addf %194, %205 : vector<2x512xf32>
    %c17 = arith.constant 17 : index
    %207 = memref.load %arg2[%c17] : memref<32xf32, #tpu.memory_space<smem>>
    %208 = vector.broadcast %207 : f32 to vector<2x512xf32>
    %209 = arith.mulf %208, %0 : vector<2x512xf32>
    %c17_53 = arith.constant 17 : index
    %210 = memref.load %arg3[%c17_53] : memref<32xf32, #tpu.memory_space<smem>>
    %211 = vector.broadcast %210 : f32 to vector<2x512xf32>
    %212 = arith.addf %209, %211 : vector<2x512xf32>
    %cst_54 = arith.constant 0.000000e+00 : f32
    %213 = vector.broadcast %cst_54 : f32 to vector<2x512xf32>
    %214 = arith.maximumf %212, %213 : vector<2x512xf32>
    %c17_55 = arith.constant 17 : index
    %215 = memref.load %arg4[%c17_55] : memref<32xf32, #tpu.memory_space<smem>>
    %216 = vector.broadcast %215 : f32 to vector<2x512xf32>
    %217 = arith.mulf %216, %214 : vector<2x512xf32>
    %218 = arith.addf %206, %217 : vector<2x512xf32>
    %c18 = arith.constant 18 : index
    %219 = memref.load %arg2[%c18] : memref<32xf32, #tpu.memory_space<smem>>
    %220 = vector.broadcast %219 : f32 to vector<2x512xf32>
    %221 = arith.mulf %220, %0 : vector<2x512xf32>
    %c18_56 = arith.constant 18 : index
    %222 = memref.load %arg3[%c18_56] : memref<32xf32, #tpu.memory_space<smem>>
    %223 = vector.broadcast %222 : f32 to vector<2x512xf32>
    %224 = arith.addf %221, %223 : vector<2x512xf32>
    %cst_57 = arith.constant 0.000000e+00 : f32
    %225 = vector.broadcast %cst_57 : f32 to vector<2x512xf32>
    %226 = arith.maximumf %224, %225 : vector<2x512xf32>
    %c18_58 = arith.constant 18 : index
    %227 = memref.load %arg4[%c18_58] : memref<32xf32, #tpu.memory_space<smem>>
    %228 = vector.broadcast %227 : f32 to vector<2x512xf32>
    %229 = arith.mulf %228, %226 : vector<2x512xf32>
    %230 = arith.addf %218, %229 : vector<2x512xf32>
    %c19 = arith.constant 19 : index
    %231 = memref.load %arg2[%c19] : memref<32xf32, #tpu.memory_space<smem>>
    %232 = vector.broadcast %231 : f32 to vector<2x512xf32>
    %233 = arith.mulf %232, %0 : vector<2x512xf32>
    %c19_59 = arith.constant 19 : index
    %234 = memref.load %arg3[%c19_59] : memref<32xf32, #tpu.memory_space<smem>>
    %235 = vector.broadcast %234 : f32 to vector<2x512xf32>
    %236 = arith.addf %233, %235 : vector<2x512xf32>
    %cst_60 = arith.constant 0.000000e+00 : f32
    %237 = vector.broadcast %cst_60 : f32 to vector<2x512xf32>
    %238 = arith.maximumf %236, %237 : vector<2x512xf32>
    %c19_61 = arith.constant 19 : index
    %239 = memref.load %arg4[%c19_61] : memref<32xf32, #tpu.memory_space<smem>>
    %240 = vector.broadcast %239 : f32 to vector<2x512xf32>
    %241 = arith.mulf %240, %238 : vector<2x512xf32>
    %242 = arith.addf %230, %241 : vector<2x512xf32>
    %c20 = arith.constant 20 : index
    %243 = memref.load %arg2[%c20] : memref<32xf32, #tpu.memory_space<smem>>
    %244 = vector.broadcast %243 : f32 to vector<2x512xf32>
    %245 = arith.mulf %244, %0 : vector<2x512xf32>
    %c20_62 = arith.constant 20 : index
    %246 = memref.load %arg3[%c20_62] : memref<32xf32, #tpu.memory_space<smem>>
    %247 = vector.broadcast %246 : f32 to vector<2x512xf32>
    %248 = arith.addf %245, %247 : vector<2x512xf32>
    %cst_63 = arith.constant 0.000000e+00 : f32
    %249 = vector.broadcast %cst_63 : f32 to vector<2x512xf32>
    %250 = arith.maximumf %248, %249 : vector<2x512xf32>
    %c20_64 = arith.constant 20 : index
    %251 = memref.load %arg4[%c20_64] : memref<32xf32, #tpu.memory_space<smem>>
    %252 = vector.broadcast %251 : f32 to vector<2x512xf32>
    %253 = arith.mulf %252, %250 : vector<2x512xf32>
    %254 = arith.addf %242, %253 : vector<2x512xf32>
    %c21 = arith.constant 21 : index
    %255 = memref.load %arg2[%c21] : memref<32xf32, #tpu.memory_space<smem>>
    %256 = vector.broadcast %255 : f32 to vector<2x512xf32>
    %257 = arith.mulf %256, %0 : vector<2x512xf32>
    %c21_65 = arith.constant 21 : index
    %258 = memref.load %arg3[%c21_65] : memref<32xf32, #tpu.memory_space<smem>>
    %259 = vector.broadcast %258 : f32 to vector<2x512xf32>
    %260 = arith.addf %257, %259 : vector<2x512xf32>
    %cst_66 = arith.constant 0.000000e+00 : f32
    %261 = vector.broadcast %cst_66 : f32 to vector<2x512xf32>
    %262 = arith.maximumf %260, %261 : vector<2x512xf32>
    %c21_67 = arith.constant 21 : index
    %263 = memref.load %arg4[%c21_67] : memref<32xf32, #tpu.memory_space<smem>>
    %264 = vector.broadcast %263 : f32 to vector<2x512xf32>
    %265 = arith.mulf %264, %262 : vector<2x512xf32>
    %266 = arith.addf %254, %265 : vector<2x512xf32>
    %c22 = arith.constant 22 : index
    %267 = memref.load %arg2[%c22] : memref<32xf32, #tpu.memory_space<smem>>
    %268 = vector.broadcast %267 : f32 to vector<2x512xf32>
    %269 = arith.mulf %268, %0 : vector<2x512xf32>
    %c22_68 = arith.constant 22 : index
    %270 = memref.load %arg3[%c22_68] : memref<32xf32, #tpu.memory_space<smem>>
    %271 = vector.broadcast %270 : f32 to vector<2x512xf32>
    %272 = arith.addf %269, %271 : vector<2x512xf32>
    %cst_69 = arith.constant 0.000000e+00 : f32
    %273 = vector.broadcast %cst_69 : f32 to vector<2x512xf32>
    %274 = arith.maximumf %272, %273 : vector<2x512xf32>
    %c22_70 = arith.constant 22 : index
    %275 = memref.load %arg4[%c22_70] : memref<32xf32, #tpu.memory_space<smem>>
    %276 = vector.broadcast %275 : f32 to vector<2x512xf32>
    %277 = arith.mulf %276, %274 : vector<2x512xf32>
    %278 = arith.addf %266, %277 : vector<2x512xf32>
    %c23 = arith.constant 23 : index
    %279 = memref.load %arg2[%c23] : memref<32xf32, #tpu.memory_space<smem>>
    %280 = vector.broadcast %279 : f32 to vector<2x512xf32>
    %281 = arith.mulf %280, %0 : vector<2x512xf32>
    %c23_71 = arith.constant 23 : index
    %282 = memref.load %arg3[%c23_71] : memref<32xf32, #tpu.memory_space<smem>>
    %283 = vector.broadcast %282 : f32 to vector<2x512xf32>
    %284 = arith.addf %281, %283 : vector<2x512xf32>
    %cst_72 = arith.constant 0.000000e+00 : f32
    %285 = vector.broadcast %cst_72 : f32 to vector<2x512xf32>
    %286 = arith.maximumf %284, %285 : vector<2x512xf32>
    %c23_73 = arith.constant 23 : index
    %287 = memref.load %arg4[%c23_73] : memref<32xf32, #tpu.memory_space<smem>>
    %288 = vector.broadcast %287 : f32 to vector<2x512xf32>
    %289 = arith.mulf %288, %286 : vector<2x512xf32>
    %290 = arith.addf %278, %289 : vector<2x512xf32>
    %c24 = arith.constant 24 : index
    %291 = memref.load %arg2[%c24] : memref<32xf32, #tpu.memory_space<smem>>
    %292 = vector.broadcast %291 : f32 to vector<2x512xf32>
    %293 = arith.mulf %292, %0 : vector<2x512xf32>
    %c24_74 = arith.constant 24 : index
    %294 = memref.load %arg3[%c24_74] : memref<32xf32, #tpu.memory_space<smem>>
    %295 = vector.broadcast %294 : f32 to vector<2x512xf32>
    %296 = arith.addf %293, %295 : vector<2x512xf32>
    %cst_75 = arith.constant 0.000000e+00 : f32
    %297 = vector.broadcast %cst_75 : f32 to vector<2x512xf32>
    %298 = arith.maximumf %296, %297 : vector<2x512xf32>
    %c24_76 = arith.constant 24 : index
    %299 = memref.load %arg4[%c24_76] : memref<32xf32, #tpu.memory_space<smem>>
    %300 = vector.broadcast %299 : f32 to vector<2x512xf32>
    %301 = arith.mulf %300, %298 : vector<2x512xf32>
    %302 = arith.addf %290, %301 : vector<2x512xf32>
    %c25 = arith.constant 25 : index
    %303 = memref.load %arg2[%c25] : memref<32xf32, #tpu.memory_space<smem>>
    %304 = vector.broadcast %303 : f32 to vector<2x512xf32>
    %305 = arith.mulf %304, %0 : vector<2x512xf32>
    %c25_77 = arith.constant 25 : index
    %306 = memref.load %arg3[%c25_77] : memref<32xf32, #tpu.memory_space<smem>>
    %307 = vector.broadcast %306 : f32 to vector<2x512xf32>
    %308 = arith.addf %305, %307 : vector<2x512xf32>
    %cst_78 = arith.constant 0.000000e+00 : f32
    %309 = vector.broadcast %cst_78 : f32 to vector<2x512xf32>
    %310 = arith.maximumf %308, %309 : vector<2x512xf32>
    %c25_79 = arith.constant 25 : index
    %311 = memref.load %arg4[%c25_79] : memref<32xf32, #tpu.memory_space<smem>>
    %312 = vector.broadcast %311 : f32 to vector<2x512xf32>
    %313 = arith.mulf %312, %310 : vector<2x512xf32>
    %314 = arith.addf %302, %313 : vector<2x512xf32>
    %c26 = arith.constant 26 : index
    %315 = memref.load %arg2[%c26] : memref<32xf32, #tpu.memory_space<smem>>
    %316 = vector.broadcast %315 : f32 to vector<2x512xf32>
    %317 = arith.mulf %316, %0 : vector<2x512xf32>
    %c26_80 = arith.constant 26 : index
    %318 = memref.load %arg3[%c26_80] : memref<32xf32, #tpu.memory_space<smem>>
    %319 = vector.broadcast %318 : f32 to vector<2x512xf32>
    %320 = arith.addf %317, %319 : vector<2x512xf32>
    %cst_81 = arith.constant 0.000000e+00 : f32
    %321 = vector.broadcast %cst_81 : f32 to vector<2x512xf32>
    %322 = arith.maximumf %320, %321 : vector<2x512xf32>
    %c26_82 = arith.constant 26 : index
    %323 = memref.load %arg4[%c26_82] : memref<32xf32, #tpu.memory_space<smem>>
    %324 = vector.broadcast %323 : f32 to vector<2x512xf32>
    %325 = arith.mulf %324, %322 : vector<2x512xf32>
    %326 = arith.addf %314, %325 : vector<2x512xf32>
    %c27 = arith.constant 27 : index
    %327 = memref.load %arg2[%c27] : memref<32xf32, #tpu.memory_space<smem>>
    %328 = vector.broadcast %327 : f32 to vector<2x512xf32>
    %329 = arith.mulf %328, %0 : vector<2x512xf32>
    %c27_83 = arith.constant 27 : index
    %330 = memref.load %arg3[%c27_83] : memref<32xf32, #tpu.memory_space<smem>>
    %331 = vector.broadcast %330 : f32 to vector<2x512xf32>
    %332 = arith.addf %329, %331 : vector<2x512xf32>
    %cst_84 = arith.constant 0.000000e+00 : f32
    %333 = vector.broadcast %cst_84 : f32 to vector<2x512xf32>
    %334 = arith.maximumf %332, %333 : vector<2x512xf32>
    %c27_85 = arith.constant 27 : index
    %335 = memref.load %arg4[%c27_85] : memref<32xf32, #tpu.memory_space<smem>>
    %336 = vector.broadcast %335 : f32 to vector<2x512xf32>
    %337 = arith.mulf %336, %334 : vector<2x512xf32>
    %338 = arith.addf %326, %337 : vector<2x512xf32>
    %c28 = arith.constant 28 : index
    %339 = memref.load %arg2[%c28] : memref<32xf32, #tpu.memory_space<smem>>
    %340 = vector.broadcast %339 : f32 to vector<2x512xf32>
    %341 = arith.mulf %340, %0 : vector<2x512xf32>
    %c28_86 = arith.constant 28 : index
    %342 = memref.load %arg3[%c28_86] : memref<32xf32, #tpu.memory_space<smem>>
    %343 = vector.broadcast %342 : f32 to vector<2x512xf32>
    %344 = arith.addf %341, %343 : vector<2x512xf32>
    %cst_87 = arith.constant 0.000000e+00 : f32
    %345 = vector.broadcast %cst_87 : f32 to vector<2x512xf32>
    %346 = arith.maximumf %344, %345 : vector<2x512xf32>
    %c28_88 = arith.constant 28 : index
    %347 = memref.load %arg4[%c28_88] : memref<32xf32, #tpu.memory_space<smem>>
    %348 = vector.broadcast %347 : f32 to vector<2x512xf32>
    %349 = arith.mulf %348, %346 : vector<2x512xf32>
    %350 = arith.addf %338, %349 : vector<2x512xf32>
    %c29 = arith.constant 29 : index
    %351 = memref.load %arg2[%c29] : memref<32xf32, #tpu.memory_space<smem>>
    %352 = vector.broadcast %351 : f32 to vector<2x512xf32>
    %353 = arith.mulf %352, %0 : vector<2x512xf32>
    %c29_89 = arith.constant 29 : index
    %354 = memref.load %arg3[%c29_89] : memref<32xf32, #tpu.memory_space<smem>>
    %355 = vector.broadcast %354 : f32 to vector<2x512xf32>
    %356 = arith.addf %353, %355 : vector<2x512xf32>
    %cst_90 = arith.constant 0.000000e+00 : f32
    %357 = vector.broadcast %cst_90 : f32 to vector<2x512xf32>
    %358 = arith.maximumf %356, %357 : vector<2x512xf32>
    %c29_91 = arith.constant 29 : index
    %359 = memref.load %arg4[%c29_91] : memref<32xf32, #tpu.memory_space<smem>>
    %360 = vector.broadcast %359 : f32 to vector<2x512xf32>
    %361 = arith.mulf %360, %358 : vector<2x512xf32>
    %362 = arith.addf %350, %361 : vector<2x512xf32>
    %c30 = arith.constant 30 : index
    %363 = memref.load %arg2[%c30] : memref<32xf32, #tpu.memory_space<smem>>
    %364 = vector.broadcast %363 : f32 to vector<2x512xf32>
    %365 = arith.mulf %364, %0 : vector<2x512xf32>
    %c30_92 = arith.constant 30 : index
    %366 = memref.load %arg3[%c30_92] : memref<32xf32, #tpu.memory_space<smem>>
    %367 = vector.broadcast %366 : f32 to vector<2x512xf32>
    %368 = arith.addf %365, %367 : vector<2x512xf32>
    %cst_93 = arith.constant 0.000000e+00 : f32
    %369 = vector.broadcast %cst_93 : f32 to vector<2x512xf32>
    %370 = arith.maximumf %368, %369 : vector<2x512xf32>
    %c30_94 = arith.constant 30 : index
    %371 = memref.load %arg4[%c30_94] : memref<32xf32, #tpu.memory_space<smem>>
    %372 = vector.broadcast %371 : f32 to vector<2x512xf32>
    %373 = arith.mulf %372, %370 : vector<2x512xf32>
    %374 = arith.addf %362, %373 : vector<2x512xf32>
    %c31 = arith.constant 31 : index
    %375 = memref.load %arg2[%c31] : memref<32xf32, #tpu.memory_space<smem>>
    %376 = vector.broadcast %375 : f32 to vector<2x512xf32>
    %377 = arith.mulf %376, %0 : vector<2x512xf32>
    %c31_95 = arith.constant 31 : index
    %378 = memref.load %arg3[%c31_95] : memref<32xf32, #tpu.memory_space<smem>>
    %379 = vector.broadcast %378 : f32 to vector<2x512xf32>
    %380 = arith.addf %377, %379 : vector<2x512xf32>
    %cst_96 = arith.constant 0.000000e+00 : f32
    %381 = vector.broadcast %cst_96 : f32 to vector<2x512xf32>
    %382 = arith.maximumf %380, %381 : vector<2x512xf32>
    %c31_97 = arith.constant 31 : index
    %383 = memref.load %arg4[%c31_97] : memref<32xf32, #tpu.memory_space<smem>>
    %384 = vector.broadcast %383 : f32 to vector<2x512xf32>
    %385 = arith.mulf %384, %382 : vector<2x512xf32>
    %386 = arith.addf %374, %385 : vector<2x512xf32>
    %c0_98 = arith.constant 0 : index
    %c0_99 = arith.constant 0 : index
    %387 = vector.load %arg6[%c0_98, %c0_99] : memref<2x512xf32, #tpu.memory_space<vmem>>, vector<2x512xf32>
    tpu.vector_store %arg6[%c0_98, %c0_99], %386 {strides = array<i32>} : memref<2x512xf32, #tpu.memory_space<vmem>>, vector<2x512xf32>,
    return
  }
  func.func @transform_0(%arg0: i32) -> (i32, i32) {
    %c0_i32 = arith.constant 0 : i32
    %c0_i32_0 = arith.constant 0 : i32
    return %arg0, %c0_i32 : i32, i32
  }
  func.func @transform_1(%arg0: i32) -> i32 {
    %c0_i32 = arith.constant 0 : i32
    %c0_i32_0 = arith.constant 0 : i32
    return %c0_i32 : i32
  }
  func.func @transform_2(%arg0: i32) -> i32 {
    %c0_i32 = arith.constant 0 : i32
    %c0_i32_0 = arith.constant 0 : i32
    return %c0_i32 : i32
  }
  func.func @transform_3(%arg0: i32) -> i32 {
    %c0_i32 = arith.constant 0 : i32
    %c0_i32_0 = arith.constant 0 : i32
    return %c0_i32 : i32
  }
  func.func @transform_4(%arg0: i32) -> i32 {
    %c0_i32 = arith.constant 0 : i32
    %c0_i32_0 = arith.constant 0 : i32
    return %c0_i32 : i32
  }
  func.func @transform_5(%arg0: i32) -> (i32, i32) {
    %c0_i32 = arith.constant 0 : i32
    %c0_i32_0 = arith.constant 0 : i32
    return %arg0, %c0_i32 : i32, i32
  }
}

</mosaic_0001>

<llo_original>
// kernel: tpu_custom_call.1
$region0: #{tpu_custom_call.1}
  #allocation0 [shape = 'u32[]', space=smem, size = 0x4, offset = 0x4, fixed_abs, tag = 'smem constant byte address 0x4 - core index']
  #allocation1 [shape = 'u32[72,128]{1,0:T(1,128)}', space=vmem, size = 0x9000, scoped, tag = 'internal scratch']
  #allocation2 [shape = 'f32[1]{0:T(128)S(6)}', space=smem, size = 0x200, scoped, tag = 'scoped memory for tpu_custom_call.1']
  %s0 = inlined_call_operand.hbm [shape: f32[2,512], index: 0, kind: input, shape index: {}]
  %s1 = inlined_call_operand.vmem [shape: f32[32], index: 1, kind: input, shape index: {}]
  %s2 = inlined_call_operand.vmem [shape: f32[32], index: 2, kind: input, shape index: {}]
  %s3 = inlined_call_operand.vmem [shape: f32[32], index: 3, kind: input, shape index: {}]
  %s4 = inlined_call_operand.<no memory space> [shape: f32[1], index: 4, kind: input, shape index: {}]
  %s5 = inlined_call_operand.hbm [shape: f32[2,512], index: 5, kind: output, shape index: {}]
  %s6 = sld [smem:[#allocation0]]
  $region46: #{tpu_custom_call.1} parent=0
    _
  %s8 = ssub.s32 1, %s6
  %s9 = scalar_select 0, %s8, %s6
  %10 = sst [smem:[#allocation2]] %s4
  $region1: #{tpu_custom_call.1} parent=0
    #allocation3 [shape = 'u8[4096]{0}', space=vmem, size = 0x1000, scoped, tag = 'input window, operand 0, single buffered']
    #allocation4 [shape = 's32[1]{0}', space=sflag, size = 0x4, scoped, tag = 'scoped memory for tpu_custom_call.1']
    #allocation5 [shape = 's32[1]{0}', space=sflag, size = 0x4, scoped, tag = 'scoped memory for tpu_custom_call.1']
    #allocation6 [shape = 's32[1]{0}', space=sflag, size = 0x4, scoped, tag = 'scoped memory for tpu_custom_call.1']
    #allocation7 [shape = 'u8[512]{0}', space=smem, size = 0x200, scoped, tag = 'input window, operand 1, single buffered']
    #allocation8 [shape = 'u8[512]{0}', space=smem, size = 0x200, scoped, tag = 'input window, operand 2, single buffered']
    #allocation9 [shape = 's32[1]{0}', space=sflag, size = 0x4, scoped, tag = 'scoped memory for tpu_custom_call.1']
    #allocation10 [shape = 'u8[512]{0}', space=smem, size = 0x200, scoped, tag = 'input window, operand 3, single buffered']
    #allocation11 [shape = 'u8[4096]{0}', space=vmem, size = 0x1000, scoped, tag = 'output window, operand 0, single buffered']
    %11 = vsyncpa [#allocation4], 0
    %12 = vsyncpa [#allocation6], 0
    %13 = vsyncpa [#allocation9], 0
    %14 = vsyncpa [#allocation5], 0
    // Predicated region
    $region2: #{tpu_custom_call.1} parent=1 // pred_check
      _
    $region3: #{tpu_custom_call.1} parent=1 // pred_check_branch
      %16 = sbr.rel (0) target = $region5
    $region4: #{tpu_custom_call.1} parent=1 // pred_region
      %18 = vsyncadd [#allocation4], 0
      %s20 = sshll.u32 %s0, 4
      %s21 = int_to_ptr.hbm [resolvable:$true] %s20
      %s22 = sshll.u32 [#allocation3], 4
      %s23 = int_to_ptr.vmem [resolvable:$true] %s22
      %25 = dma.hbm_to_vmem [thread:$0]  %s21, 128, %s23, [#allocation4]
    $region5: #{tpu_custom_call.1} parent=1 // pred_fallthru
      _
    // Predicated region
    $region6: #{tpu_custom_call.1} parent=1 // pred_check
      _
    $region7: #{tpu_custom_call.1} parent=1 // pred_check_branch
      %27 = sbr.rel (0) target = $region9
    $region8: #{tpu_custom_call.1} parent=1 // pred_region
      %29 = vsyncadd [#allocation6], 0
      %s31 = sshll.u32 %s1, 4
      %s32 = int_to_ptr.vmem [resolvable:$true] %s31
      %34 = dma.vmem_to_smem %s32, 16, [#allocation7], [#allocation6]
    $region9: #{tpu_custom_call.1} parent=1 // pred_fallthru
      _
    // Predicated region
    $region10: #{tpu_custom_call.1} parent=1 // pred_check
      _
    $region11: #{tpu_custom_call.1} parent=1 // pred_check_branch
      %36 = sbr.rel (0) target = $region13
    $region12: #{tpu_custom_call.1} parent=1 // pred_region
      %38 = vsyncadd [#allocation9], 0
      %s40 = sshll.u32 %s2, 4
      %s41 = int_to_ptr.vmem [resolvable:$true] %s40
      %43 = dma.vmem_to_smem %s41, 16, [#allocation8], [#allocation9]
    $region13: #{tpu_custom_call.1} parent=1 // pred_fallthru
      _
    // Predicated region
    $region14: #{tpu_custom_call.1} parent=1 // pred_check
      _
    $region15: #{tpu_custom_call.1} parent=1 // pred_check_branch
      %45 = sbr.rel (0) target = $region17
    $region16: #{tpu_custom_call.1} parent=1 // pred_region
      %47 = vsyncadd [#allocation9], 0
      %s49 = sshll.u32 %s3, 4
      %s50 = int_to_ptr.vmem [resolvable:$true] %s49
      %52 = dma.vmem_to_smem %s50, 16, [#allocation10], [#allocation9]
    $region17: #{tpu_custom_call.1} parent=1 // pred_fallthru
      _
    // Predicated region
    $region18: #{tpu_custom_call.1} parent=1 // pred_check
      _
    $region19: #{tpu_custom_call.1} parent=1 // pred_check_branch
      %54 = sbr.rel (0) target = $region21
    $region20: #{tpu_custom_call.1} parent=1 // pred_region
      _
    $region21: #{tpu_custom_call.1} parent=1 // pred_fallthru
      _
    // Predicated region
    $region22: #{tpu_custom_call.1} parent=1 // pred_check
      _
    $region23: #{tpu_custom_call.1} parent=1 // pred_check_branch
      %56 = sbr.rel (0) target = $region25
    $region24: #{tpu_custom_call.1} parent=1 // pred_region
      %58 = dma.done [#allocation4], 128
    $region25: #{tpu_custom_call.1} parent=1 // pred_fallthru
      _
    // Predicated region
    $region26: #{tpu_custom_call.1} parent=1 // pred_check
      _
    $region27: #{tpu_custom_call.1} parent=1 // pred_check_branch
      %60 = sbr.rel (0) target = $region29
    $region28: #{tpu_custom_call.1} parent=1 // pred_region
      %62 = dma.done [#allocation6], 16
    $region29: #{tpu_custom_call.1} parent=1 // pred_fallthru
      _
    // Predicated region
    $region30: #{tpu_custom_call.1} parent=1 // pred_check
      _
    $region31: #{tpu_custom_call.1} parent=1 // pred_check_branch
      %64 = sbr.rel (0) target = $region33
    $region32: #{tpu_custom_call.1} parent=1 // pred_region
      %66 = dma.done [#allocation9], 16
    $region33: #{tpu_custom_call.1} parent=1 // pred_fallthru
      _
    // Predicated region
    $region34: #{tpu_custom_call.1} parent=1 // pred_check
      _
    $region35: #{tpu_custom_call.1} parent=1 // pred_check_branch
      %68 = sbr.rel (0) target = $region37
    $region36: #{tpu_custom_call.1} parent=1 // pred_region
      %70 = dma.done [#allocation9], 16
    $region37: #{tpu_custom_call.1} parent=1 // pred_fallthru
      _
    %71 = sfence
    %v72 = vld [vmem:[#allocation3] sm:$0xff]
    %s73 = sld [smem:[#allocation2]]
    %v74 = vstv %s73
    %s75 = sld [smem:[#allocation7]]
    %v76 = vstv %s75
    %v77 = vmul.f32 %v76, %v72
    %s78 = sld [smem:[#allocation8]]
    %v79 = vstv %s78
    %v80 = vadd.f32 %v77, %v79
    %v81 = vmax.f32 %v80, 0.0
    %s82 = sld [smem:[#allocation10]]
    %v83 = vstv %s82
    %v84 = vmul.f32 %v83, %v81
    %v85 = vadd.f32 %v74, %v84
    %s86 = sld [smem:[#allocation7 + $0x1]]
    %v87 = vstv %s86
    %v88 = vmul.f32 %v87, %v72
    %s89 = sld [smem:[#allocation8 + $0x1]]
    %v90 = vstv %s89
    %v91 = vadd.f32 %v88, %v90
    %v92 = vmax.f32 %v91, 0.0
    %s93 = sld [smem:[#allocation10 + $0x1]]
    %v94 = vstv %s93
    %v95 = vmul.f32 %v94, %v92
    %v96 = vadd.f32 %v85, %v95
    %s97 = sld [smem:[#allocation7 + $0x2]]
    %v98 = vstv %s97
    %v99 = vmul.f32 %v98, %v72
    %s100 = sld [smem:[#allocation8 + $0x2]]
    %v101 = vstv %s100
    %v102 = vadd.f32 %v99, %v101
    %v103 = vmax.f32 %v102, 0.0
    %s104 = sld [smem:[#allocation10 + $0x2]]
    %v105 = vstv %s104
    %v106 = vmul.f32 %v105, %v103
    %v107 = vadd.f32 %v96, %v106
    %s108 = sld [smem:[#allocation7 + $0x3]]
    %v109 = vstv %s108
    %v110 = vmul.f32 %v109, %v72
    %s111 = sld [smem:[#allocation8 + $0x3]]
    %v112 = vstv %s111
    %v113 = vadd.f32 %v110, %v112
    %v114 = vmax.f32 %v113, 0.0
    %s115 = sld [smem:[#allocation10 + $0x3]]
    %v116 = vstv %s115
    %v117 = vmul.f32 %v116, %v114
    %v118 = vadd.f32 %v107, %v117
    %s119 = sld [smem:[#allocation7 + $0x4]]
    %v120 = vstv %s119
    %v121 = vmul.f32 %v120, %v72
    %s122 = sld [smem:[#allocation8 + $0x4]]
    %v123 = vstv %s122
    %v124 = vadd.f32 %v121, %v123
    %v125 = vmax.f32 %v124, 0.0
    %s126 = sld [smem:[#allocation10 + $0x4]]
    %v127 = vstv %s126
    %v128 = vmul.f32 %v127, %v125
    %v129 = vadd.f32 %v118, %v128
    %s130 = sld [smem:[#allocation7 + $0x5]]
    %v131 = vstv %s130
    %v132 = vmul.f32 %v131, %v72
    %s133 = sld [smem:[#allocation8 + $0x5]]
    %v134 = vstv %s133
    %v135 = vadd.f32 %v132, %v134
    %v136 = vmax.f32 %v135, 0.0
    %s137 = sld [smem:[#allocation10 + $0x5]]
    %v138 = vstv %s137
    %v139 = vmul.f32 %v138, %v136
    %v140 = vadd.f32 %v129, %v139
    %s141 = sld [smem:[#allocation7 + $0x6]]
    %v142 = vstv %s141
    %v143 = vmul.f32 %v142, %v72
    %s144 = sld [smem:[#allocation8 + $0x6]]
    %v145 = vstv %s144
    %v146 = vadd.f32 %v143, %v145
    %v147 = vmax.f32 %v146, 0.0
    %s148 = sld [smem:[#allocation10 + $0x6]]
    %v149 = vstv %s148
    %v150 = vmul.f32 %v149, %v147
    %v151 = vadd.f32 %v140, %v150
    %s152 = sld [smem:[#allocation7 + $0x7]]
    %v153 = vstv %s152
    %v154 = vmul.f32 %v153, %v72
    %s155 = sld [smem:[#allocation8 + $0x7]]
    %v156 = vstv %s155
    %v157 = vadd.f32 %v154, %v156
    %v158 = vmax.f32 %v157, 0.0
    %s159 = sld [smem:[#allocation10 + $0x7]]
    %v160 = vstv %s159
    %v161 = vmul.f32 %v160, %v158
    %v162 = vadd.f32 %v151, %v161
    %s163 = sld [smem:[#allocation7 + $0x8]]
    %v164 = vstv %s163
    %v165 = vmul.f32 %v164, %v72
    %s166 = sld [smem:[#allocation8 + $0x8]]
    %v167 = vstv %s166
    %v168 = vadd.f32 %v165, %v167
    %v169 = vmax.f32 %v168, 0.0
    %s170 = sld [smem:[#allocation10 + $0x8]]
    %v171 = vstv %s170
    %v172 = vmul.f32 %v171, %v169
    %v173 = vadd.f32 %v162, %v172
    %s174 = sld [smem:[#allocation7 + $0x9]]
    %v175 = vstv %s174
    %v176 = vmul.f32 %v175, %v72
    %s177 = sld [smem:[#allocation8 + $0x9]]
    %v178 = vstv %s177
    %v179 = vadd.f32 %v176, %v178
    %v180 = vmax.f32 %v179, 0.0
    %s181 = sld [smem:[#allocation10 + $0x9]]
    %v182 = vstv %s181
    %v183 = vmul.f32 %v182, %v180
    %v184 = vadd.f32 %v173, %v183
    %s185 = sld [smem:[#allocation7 + $0xa]]
    %v186 = vstv %s185
    %v187 = vmul.f32 %v186, %v72
    %s188 = sld [smem:[#allocation8 + $0xa]]
    %v189 = vstv %s188
    %v190 = vadd.f32 %v187, %v189
    %v191 = vmax.f32 %v190, 0.0
    %s192 = sld [smem:[#allocation10 + $0xa]]
    %v193 = vstv %s192
    %v194 = vmul.f32 %v193, %v191
    %v195 = vadd.f32 %v184, %v194
    %s196 = sld [smem:[#allocation7 + $0xb]]
    %v197 = vstv %s196
    %v198 = vmul.f32 %v197, %v72
    %s199 = sld [smem:[#allocation8 + $0xb]]
    %v200 = vstv %s199
    %v201 = vadd.f32 %v198, %v200
    %v202 = vmax.f32 %v201, 0.0
    %s203 = sld [smem:[#allocation10 + $0xb]]
    %v204 = vstv %s203
    %v205 = vmul.f32 %v204, %v202
    %v206 = vadd.f32 %v195, %v205
    %s207 = sld [smem:[#allocation7 + $0xc]]
    %v208 = vstv %s207
    %v209 = vmul.f32 %v208, %v72
    %s210 = sld [smem:[#allocation8 + $0xc]]
    %v211 = vstv %s210
    %v212 = vadd.f32 %v209, %v211
    %v213 = vmax.f32 %v212, 0.0
    %s214 = sld [smem:[#allocation10 + $0xc]]
    %v215 = vstv %s214
    %v216 = vmul.f32 %v215, %v213
    %v217 = vadd.f32 %v206, %v216
    %s218 = sld [smem:[#allocation7 + $0xd]]
    %v219 = vstv %s218
    %v220 = vmul.f32 %v219, %v72
    %s221 = sld [smem:[#allocation8 + $0xd]]
    %v222 = vstv %s221
    %v223 = vadd.f32 %v220, %v222
    %v224 = vmax.f32 %v223, 0.0
    %s225 = sld [smem:[#allocation10 + $0xd]]
    %v226 = vstv %s225
    %v227 = vmul.f32 %v226, %v224
    %v228 = vadd.f32 %v217, %v227
    %s229 = sld [smem:[#allocation7 + $0xe]]
    %v230 = vstv %s229
    %v231 = vmul.f32 %v230, %v72
    %s232 = sld [smem:[#allocation8 + $0xe]]
    %v233 = vstv %s232
    %v234 = vadd.f32 %v231, %v233
    %v235 = vmax.f32 %v234, 0.0
    %s236 = sld [smem:[#allocation10 + $0xe]]
    %v237 = vstv %s236
    %v238 = vmul.f32 %v237, %v235
    %v239 = vadd.f32 %v228, %v238
    %s240 = sld [smem:[#allocation7 + $0xf]]
    %v241 = vstv %s240
    %v242 = vmul.f32 %v241, %v72
    %s243 = sld [smem:[#allocation8 + $0xf]]
    %v244 = vstv %s243
    %v245 = vadd.f32 %v242, %v244
    %v246 = vmax.f32 %v245, 0.0
    %s247 = sld [smem:[#allocation10 + $0xf]]
    %v248 = vstv %s247
    %v249 = vmul.f32 %v248, %v246
    %v250 = vadd.f32 %v239, %v249
    %s251 = sld [smem:[#allocation7 + $0x10]]
    %v252 = vstv %s251
    %v253 = vmul.f32 %v252, %v72
    %s254 = sld [smem:[#allocation8 + $0x10]]
    %v255 = vstv %s254
    %v256 = vadd.f32 %v253, %v255
    %v257 = vmax.f32 %v256, 0.0
    %s258 = sld [smem:[#allocation10 + $0x10]]
    %v259 = vstv %s258
    %v260 = vmul.f32 %v259, %v257
    %v261 = vadd.f32 %v250, %v260
    %s262 = sld [smem:[#allocation7 + $0x11]]
    %v263 = vstv %s262
    %v264 = vmul.f32 %v263, %v72
    %s265 = sld [smem:[#allocation8 + $0x11]]
    %v266 = vstv %s265
    %v267 = vadd.f32 %v264, %v266
    %v268 = vmax.f32 %v267, 0.0
    %s269 = sld [smem:[#allocation10 + $0x11]]
    %v270 = vstv %s269
    %v271 = vmul.f32 %v270, %v268
    %v272 = vadd.f32 %v261, %v271
    %s273 = sld [smem:[#allocation7 + $0x12]]
    %v274 = vstv %s273
    %v275 = vmul.f32 %v274, %v72
    %s276 = sld [smem:[#allocation8 + $0x12]]
    %v277 = vstv %s276
    %v278 = vadd.f32 %v275, %v277
    %v279 = vmax.f32 %v278, 0.0
    %s280 = sld [smem:[#allocation10 + $0x12]]
    %v281 = vstv %s280
    %v282 = vmul.f32 %v281, %v279
    %v283 = vadd.f32 %v272, %v282
    %s284 = sld [smem:[#allocation7 + $0x13]]
    %v285 = vstv %s284
    %v286 = vmul.f32 %v285, %v72
    %s287 = sld [smem:[#allocation8 + $0x13]]
    %v288 = vstv %s287
    %v289 = vadd.f32 %v286, %v288
    %v290 = vmax.f32 %v289, 0.0
    %s291 = sld [smem:[#allocation10 + $0x13]]
    %v292 = vstv %s291
    %v293 = vmul.f32 %v292, %v290
    %v294 = vadd.f32 %v283, %v293
    %s295 = sld [smem:[#allocation7 + $0x14]]
    %v296 = vstv %s295
    %v297 = vmul.f32 %v296, %v72
    %s298 = sld [smem:[#allocation8 + $0x14]]
    %v299 = vstv %s298
    %v300 = vadd.f32 %v297, %v299
    %v301 = vmax.f32 %v300, 0.0
    %s302 = sld [smem:[#allocation10 + $0x14]]
    %v303 = vstv %s302
    %v304 = vmul.f32 %v303, %v301
    %v305 = vadd.f32 %v294, %v304
    %s306 = sld [smem:[#allocation7 + $0x15]]
    %v307 = vstv %s306
    %v308 = vmul.f32 %v307, %v72
    %s309 = sld [smem:[#allocation8 + $0x15]]
    %v310 = vstv %s309
    %v311 = vadd.f32 %v308, %v310
    %v312 = vmax.f32 %v311, 0.0
    %s313 = sld [smem:[#allocation10 + $0x15]]
    %v314 = vstv %s313
    %v315 = vmul.f32 %v314, %v312
    %v316 = vadd.f32 %v305, %v315
    %s317 = sld [smem:[#allocation7 + $0x16]]
    %v318 = vstv %s317
    %v319 = vmul.f32 %v318, %v72
    %s320 = sld [smem:[#allocation8 + $0x16]]
    %v321 = vstv %s320
    %v322 = vadd.f32 %v319, %v321
    %v323 = vmax.f32 %v322, 0.0
    %s324 = sld [smem:[#allocation10 + $0x16]]
    %v325 = vstv %s324
    %v326 = vmul.f32 %v325, %v323
    %v327 = vadd.f32 %v316, %v326
    %s328 = sld [smem:[#allocation7 + $0x17]]
    %v329 = vstv %s328
    %v330 = vmul.f32 %v329, %v72
    %s331 = sld [smem:[#allocation8 + $0x17]]
    %v332 = vstv %s331
    %v333 = vadd.f32 %v330, %v332
    %v334 = vmax.f32 %v333, 0.0
    %s335 = sld [smem:[#allocation10 + $0x17]]
    %v336 = vstv %s335
    %v337 = vmul.f32 %v336, %v334
    %v338 = vadd.f32 %v327, %v337
    %s339 = sld [smem:[#allocation7 + $0x18]]
    %v340 = vstv %s339
    %v341 = vmul.f32 %v340, %v72
    %s342 = sld [smem:[#allocation8 + $0x18]]
    %v343 = vstv %s342
    %v344 = vadd.f32 %v341, %v343
    %v345 = vmax.f32 %v344, 0.0
    %s346 = sld [smem:[#allocation10 + $0x18]]
    %v347 = vstv %s346
    %v348 = vmul.f32 %v347, %v345
    %v349 = vadd.f32 %v338, %v348
    %s350 = sld [smem:[#allocation7 + $0x19]]
    %v351 = vstv %s350
    %v352 = vmul.f32 %v351, %v72
    %s353 = sld [smem:[#allocation8 + $0x19]]
    %v354 = vstv %s353
    %v355 = vadd.f32 %v352, %v354
    %v356 = vmax.f32 %v355, 0.0
    %s357 = sld [smem:[#allocation10 + $0x19]]
    %v358 = vstv %s357
    %v359 = vmul.f32 %v358, %v356
    %v360 = vadd.f32 %v349, %v359
    %s361 = sld [smem:[#allocation7 + $0x1a]]
    %v362 = vstv %s361
    %v363 = vmul.f32 %v362, %v72
    %s364 = sld [smem:[#allocation8 + $0x1a]]
    %v365 = vstv %s364
    %v366 = vadd.f32 %v363, %v365
    %v367 = vmax.f32 %v366, 0.0
    %s368 = sld [smem:[#allocation10 + $0x1a]]
    %v369 = vstv %s368
    %v370 = vmul.f32 %v369, %v367
    %v371 = vadd.f32 %v360, %v370
    %s372 = sld [smem:[#allocation7 + $0x1b]]
    %v373 = vstv %s372
    %v374 = vmul.f32 %v373, %v72
    %s375 = sld [smem:[#allocation8 + $0x1b]]
    %v376 = vstv %s375
    %v377 = vadd.f32 %v374, %v376
    %v378 = vmax.f32 %v377, 0.0
    %s379 = sld [smem:[#allocation10 + $0x1b]]
    %v380 = vstv %s379
    %v381 = vmul.f32 %v380, %v378
    %v382 = vadd.f32 %v371, %v381
    %s383 = sld [smem:[#allocation7 + $0x1c]]
    %v384 = vstv %s383
    %v385 = vmul.f32 %v384, %v72
    %s386 = sld [smem:[#allocation8 + $0x1c]]
    %v387 = vstv %s386
    %v388 = vadd.f32 %v385, %v387
    %v389 = vmax.f32 %v388, 0.0
    %s390 = sld [smem:[#allocation10 + $0x1c]]
    %v391 = vstv %s390
    %v392 = vmul.f32 %v391, %v389
    %v393 = vadd.f32 %v382, %v392
    %s394 = sld [smem:[#allocation7 + $0x1d]]
    %v395 = vstv %s394
    %v396 = vmul.f32 %v395, %v72
    %s397 = sld [smem:[#allocation8 + $0x1d]]
    %v398 = vstv %s397
    %v399 = vadd.f32 %v396, %v398
    %v400 = vmax.f32 %v399, 0.0
    %s401 = sld [smem:[#allocation10 + $0x1d]]
    %v402 = vstv %s401
    %v403 = vmul.f32 %v402, %v400
    %v404 = vadd.f32 %v393, %v403
    %s405 = sld [smem:[#allocation7 + $0x1e]]
    %v406 = vstv %s405
    %v407 = vmul.f32 %v406, %v72
    %s408 = sld [smem:[#allocation8 + $0x1e]]
    %v409 = vstv %s408
    %v410 = vadd.f32 %v407, %v409
    %v411 = vmax.f32 %v410, 0.0
    %s412 = sld [smem:[#allocation10 + $0x1e]]
    %v413 = vstv %s412
    %v414 = vmul.f32 %v413, %v411
    %v415 = vadd.f32 %v404, %v414
    %s416 = sld [smem:[#allocation7 + $0x1f]]
    %v417 = vstv %s416
    %v418 = vmul.f32 %v417, %v72
    %s419 = sld [smem:[#allocation8 + $0x1f]]
    %v420 = vstv %s419
    %v421 = vadd.f32 %v418, %v420
    %v422 = vmax.f32 %v421, 0.0
    %s423 = sld [smem:[#allocation10 + $0x1f]]
    %v424 = vstv %s423
    %v425 = vmul.f32 %v424, %v422
    %v426 = vadd.f32 %v415, %v425
    %427 = vst [vmem:[#allocation11] sm:$0xff] %v426
    // Predicated region
    $region38: #{tpu_custom_call.1} parent=1 // pred_check
      _
    $region39: #{tpu_custom_call.1} parent=1 // pred_check_branch
      %429 = sbr.rel (0) target = $region41
    $region40: #{tpu_custom_call.1} parent=1 // pred_region
      %431 = vsyncadd [#allocation5], 0
      %s433 = sshll.u32 [#allocation11], 4
      %s434 = int_to_ptr.vmem [resolvable:$true] %s433
      %s435 = sshll.u32 %s5, 4
      %s436 = int_to_ptr.hbm [resolvable:$true] %s435
      %438 = dma.vmem_to_hbm [thread:$0]  %s434, 128, %s436, [#allocation5]
    $region41: #{tpu_custom_call.1} parent=1 // pred_fallthru
      _
    // Predicated region
    $region42: #{tpu_custom_call.1} parent=1 // pred_check
      _
    $region43: #{tpu_custom_call.1} parent=1 // pred_check_branch
      %440 = sbr.rel (0) target = $region45
    $region44: #{tpu_custom_call.1} parent=1 // pred_region
      %442 = dma.done [#allocation5], 128
    $region45: #{tpu_custom_call.1} parent=1 // pred_fallthru
      _
    %443 = vsyncpa [#allocation4], 1
    %444 = vsyncpa [#allocation5], 1
    %445 = vsyncpa [#allocation6], 1
    %446 = vsyncpa [#allocation9], 1

</llo_original>
